<compile_context>
chip_gen: v7x
topology: tpu7x:2x2x1
jax: 0.10.0
libtpu: 0.0.40
codegen_flags: <defaults>
</compile_context>

<pallas_src>
import numpy as np
import jax
import jax.numpy as jnp
from jax import lax
from jax.experimental import pallas as pl
from jax.experimental.pallas import tpu as pltpu


# --------------------------------------------------------------------------------------
# Per-batch prep kernel: g / phi branches (1x1 conv + 2x2 max-pool), executed once per batch.
# --------------------------------------------------------------------------------------
def _make_prep_kernel(fused, cf_out, compute_dtype):
    def kernel(xw_ref, w_ref, b_ref, *rest):
        # xw_ref : (1, 4*Nsub, C)  row-stacked 2x2 window members, channels-last (compute_dtype)
        # w_ref  : (2, C, IC)      [w_g, w_phi]                                   (compute_dtype)
        # b_ref  : (2, IC)         [b_g, b_phi]                                   (f32)
        xw = xw_ref[0]
        nsub = xw.shape[0] // 4

        def conv_pool(w, b):
            o = jnp.dot(xw, w, preferred_element_type=jnp.float32) + b       # (4*Nsub, IC)
            m01 = jnp.maximum(o[0 * nsub:1 * nsub], o[1 * nsub:2 * nsub])
            m23 = jnp.maximum(o[2 * nsub:3 * nsub], o[3 * nsub:4 * nsub])
            return jnp.maximum(m01, m23)                                     # (Nsub, IC)

        g = conv_pool(w_ref[0], b_ref[0:1, :])
        phi = conv_pool(w_ref[1], b_ref[1:2, :])

        if fused:
            # rest = (wW_ref, w2_ref): fold the whole value path into W2 = (phi^T g) @ W_bn.
            wW_ref, w2_ref = rest
            m = lax.dot_general(phi.astype(compute_dtype), g.astype(compute_dtype),
                                (((0,), (0,)), ((), ())),
                                preferred_element_type=jnp.float32)          # (IC, IC)
            w2 = jnp.dot(m.astype(compute_dtype), wW_ref[...],
                         preferred_element_type=jnp.float32)                 # (IC, C)
            w2_ref[0] = (w2.T if cf_out else w2).astype(w2_ref.dtype)
        else:
            g_ref, phiT_ref = rest
            g_ref[0] = g.astype(g_ref.dtype)                                 # (Nsub, IC)
            # once-per-batch XLU transpose so the main kernel's f = theta @ phi_T is plain A@B
            phiT_ref[0] = phi.T.astype(phiT_ref.dtype)                       # (IC, Nsub)

    return kernel


# --------------------------------------------------------------------------------------
# Main kernel: theta conv, attention, W conv + BN + residual, per (batch, query-tile).
# --------------------------------------------------------------------------------------
def _make_main_kernel(emit_nl, cf_out, compute_dtype):
    def kernel(*refs):
        it = iter(refs)
        x_ref = next(it)                            # (1, tn, C)   compute_dtype
        xcf_ref = next(it) if cf_out else None      # (1, C, tn)   x dtype (residual, C<128 only)
        if emit_nl:
            g_ref = next(it)                        # (1, Nsub, IC)
            phiT_ref = next(it)                     # (1, IC, Nsub)
        else:
            w2_ref = next(it)                       # (1, C, IC) if cf_out else (1, IC, C)
        wth_ref = next(it)                          # (C, IC)   theta weights, 1/Nsub folded
        bth_ref = next(it)                          # (1, IC)   f32, 1/Nsub folded
        if emit_nl:
            wW_ref = next(it)                       # (C, IC) if cf_out else (IC, C)  (BN folded)
        bw_ref = next(it)                           # (C, 1) if cf_out else (1, C)    (BN folded)
        z_ref = next(it)
        f_ref = next(it) if emit_nl else None

        xb = x_ref[0]                               # (tn, C)
        # theta 1x1 conv; the 1/Nsub attention normalization is folded into wth/bth.
        theta = (jnp.dot(xb, wth_ref[...], preferred_element_type=jnp.float32)
                 + bth_ref[...]).astype(compute_dtype)                        # (tn, IC)

        if emit_nl:
            f_div_c = jnp.dot(theta, phiT_ref[0],
                              preferred_element_type=jnp.float32)             # (tn, Nsub)
            f_ref[0] = f_div_c.astype(f_ref.dtype)
            y = jnp.dot(f_div_c.astype(compute_dtype), g_ref[0],
                        preferred_element_type=jnp.float32).astype(compute_dtype)  # (tn, IC)
            w_last = wW_ref[...]
        else:
            # reassociated value path:  y @ W_bn == theta @ [(phi^T g) @ W_bn] == theta @ W2
            y = theta
            w_last = w2_ref[0]

        if cf_out:
            # (C, tn) output tile: lane-dense along positions when C < 128.
            wy_t = lax.dot_general(w_last, y, (((1,), (1,)), ((), ())),
                                   preferred_element_type=jnp.float32)        # (C, tn)
            z_ref[0] = (wy_t + bw_ref[...] + xcf_ref[0].astype(jnp.float32)).astype(z_ref.dtype)
        else:
            wy = jnp.dot(y, w_last, preferred_element_type=jnp.float32)       # (tn, C)
            z_ref[0] = (wy + bw_ref[...] + xb.astype(jnp.float32)).astype(z_ref.dtype)

    return kernel


# --------------------------------------------------------------------------------------
# VMEM budgeting / tile selection (generation aware).
# --------------------------------------------------------------------------------------
def _vmem_budget_bytes():
    cap = 128 * 1024 * 1024
    try:
        info = pltpu.get_tpu_info()
        cap = int(getattr(info, "vmem_capacity_bytes", cap))
    except Exception:
        pass
    # ~75% of physical VMEM (leaves headroom for Mosaic scratch; v7x => 48 MiB, v5e/v6e => 96 MiB)
    return min((cap * 3) // 4, 100 * 1024 * 1024)


def _tile_vmem_bytes(tn, C, IC, Nsub, cd_bytes, x_bytes, nl_bytes, emit_nl, cf_out):
    b = 2 * tn * C * cd_bytes                         # x_rows (double-buffered)
    if cf_out:
        b += 2 * C * tn * x_bytes                     # x_cf residual stream (C < 128 only)
    if emit_nl:
        b += 2 * (Nsub * IC + IC * Nsub) * cd_bytes   # g, phi_T
        b += 2 * tn * Nsub * nl_bytes                 # nl_map output block
        b += tn * Nsub * 4                            # f32 attention intermediate
    else:
        b += 2 * IC * C * cd_bytes                    # per-batch fused W2
    b += 2 * C * tn * x_bytes                         # z output block
    b += 2 * 2 * C * IC * cd_bytes + 8192             # weights / biases
    b += 4 * tn * max(C, IC) * 4                      # theta / y / wy f32 temporaries (rough)
    return b


def _pick_tile(N, C, IC, Nsub, cd_bytes, x_bytes, nl_bytes, emit_nl, cf_out, budget):
    cands = [t for t in (512, 256, 128) if t <= N and N % t == 0]
    if not cands:
        cands = [N]  # TODO(synk): padded/masked tile path for N not a multiple of 128
    # prefer >= 2 n-tiles per batch so both v7x TensorCores get work
    multi = [t for t in cands if N // t >= 2]
    if multi:
        cands = multi
    for t in cands:
        if _tile_vmem_bytes(t, C, IC, Nsub, cd_bytes, x_bytes, nl_bytes, emit_nl, cf_out) <= budget:
            return t
    return cands[-1]


# --------------------------------------------------------------------------------------
# Wrapper
# --------------------------------------------------------------------------------------
def nonlocal_block_2d(x_nchw, params, *, return_nl_map=False,
                      compute_dtype=jnp.bfloat16, nl_map_dtype=jnp.bfloat16,
                      tn=None, eps=1e-5):
    B, C, H, W = x_nchw.shape
    assert H % 2 == 0 and W % 2 == 0, "2x2 maxpool path assumes even spatial dims"
    N = H * W
    Hp, Wp = H // 2, W // 2
    Nsub = Hp * Wp
    IC = params['w_theta'].shape[1]
    cd = compute_dtype
    x_dt = x_nchw.dtype
    cf_out = C < 128      # channels-first z tile only when C is too small for a lane-dense row store

    # ---- layouts -------------------------------------------------------------------
    x_nhwc = jnp.transpose(x_nchw, (0, 2, 3, 1))                       # (B, H, W, C)
    x_rows = x_nhwc.reshape(B, N, C).astype(cd)                        # queries, channels-last
    x_win = (x_nhwc.reshape(B, Hp, 2, Wp, 2, C)
                    .transpose(0, 2, 4, 1, 3, 5)
                    .reshape(B, 4 * Nsub, C).astype(cd))               # row-stacked 2x2 members
    x_cf = x_nchw.reshape(B, C, N) if cf_out else None                 # residual stream (free view)

    # ---- scalar / BN folding (outside the hot loop) ----------------------------------
    inv_n = 1.0 / float(Nsub)
    w_theta_s = (params['w_theta'] * inv_n).astype(cd)                                 # (C, IC)
    b_theta_s = (params['b_theta'].reshape(1, IC) * inv_n).astype(jnp.float32)
    inv_std = 1.0 / jnp.sqrt(params['running_var'].reshape(-1).astype(jnp.float32) + eps)
    bn_scale = params['gamma'].reshape(-1).astype(jnp.float32) * inv_std               # (C,)
    w_W_fold = params['w_W'].astype(jnp.float32) * bn_scale[None, :]                   # (IC, C)
    b_W_fold = ((params['b_W'].reshape(-1).astype(jnp.float32)
                 - params['running_mean'].reshape(-1).astype(jnp.float32)) * bn_scale
                + params['beta'].reshape(-1).astype(jnp.float32))                      # (C,)

    w_gp = jnp.stack([params['w_g'], params['w_phi']], axis=0).astype(cd)              # (2, C, IC)
    b_gp = jnp.concatenate([params['b_g'].reshape(1, IC),
                            params['b_phi'].reshape(1, IC)], axis=0).astype(jnp.float32)

    vmem_budget = _vmem_budget_bytes()

    # ---- 1) per-batch prep: g/phi conv + pool (hoisted out of the tile loop) ---------
    prep_in = [x_win, w_gp, b_gp]
    prep_in_specs = [
        pl.BlockSpec((1, 4 * Nsub, C), lambda b: (b, 0, 0)),
        pl.BlockSpec((2, C, IC), lambda b: (0, 0, 0)),
        pl.BlockSpec((2, IC), lambda b: (0, 0)),
    ]
    if return_nl_map:
        prep_out_shape = (jax.ShapeDtypeStruct((B, Nsub, IC), cd),
                          jax.ShapeDtypeStruct((B, IC, Nsub), cd))
        prep_out_specs = (pl.BlockSpec((1, Nsub, IC), lambda b: (b, 0, 0)),
                          pl.BlockSpec((1, IC, Nsub), lambda b: (b, 0, 0)))
    else:
        prep_in.append(w_W_fold.astype(cd))
        prep_in_specs.append(pl.BlockSpec((IC, C), lambda b: (0, 0)))
        w2_shape = (B, C, IC) if cf_out else (B, IC, C)
        prep_out_shape = (jax.ShapeDtypeStruct(w2_shape, cd),)
        prep_out_specs = (pl.BlockSpec((1,) + w2_shape[1:], lambda b: (b, 0, 0)),)

    prep_out = pl.pallas_call(
        _make_prep_kernel(not return_nl_map, cf_out, cd),
        out_shape=prep_out_shape,
        grid_spec=pltpu.PrefetchScalarGridSpec(
            num_scalar_prefetch=0, grid=(B,),
            in_specs=prep_in_specs, out_specs=prep_out_specs),
        compiler_params=pltpu.CompilerParams(
            dimension_semantics=("parallel",),
            vmem_limit_bytes=vmem_budget),
    )(*prep_in)

    # ---- 2) main kernel over (batch, query tiles) -------------------------------------
    cd_bytes = jnp.dtype(cd).itemsize
    x_bytes = jnp.dtype(x_dt).itemsize
    nl_bytes = jnp.dtype(nl_map_dtype).itemsize
    if tn is None:
        tn = _pick_tile(N, C, IC, Nsub, cd_bytes, x_bytes, nl_bytes,
                        return_nl_map, cf_out, vmem_budget)
    assert N % tn == 0
    n_tiles = N // tn

    main_in = [x_rows]
    main_specs = [pl.BlockSpec((1, tn, C), lambda b, n: (b, n, 0))]
    if cf_out:
        main_in.append(x_cf)
        main_specs.append(pl.BlockSpec((1, C, tn), lambda b, n: (b, 0, n)))
    if return_nl_map:
        g_x, phi_T = prep_out
        main_in += [g_x, phi_T]
        main_specs += [pl.BlockSpec((1, Nsub, IC), lambda b, n: (b, 0, 0)),
                       pl.BlockSpec((1, IC, Nsub), lambda b, n: (b, 0, 0))]
    else:
        (w2,) = prep_out
        main_in.append(w2)
        main_specs.append(pl.BlockSpec((1,) + w2.shape[1:], lambda b, n: (b, 0, 0)))

    main_in += [w_theta_s, b_theta_s]
    main_specs += [pl.BlockSpec((C, IC), lambda b, n: (0, 0)),
                   pl.BlockSpec((1, IC), lambda b, n: (0, 0))]
    if return_nl_map:
        w_out = (w_W_fold.T if cf_out else w_W_fold).astype(cd)       # (C, IC) or (IC, C)
        main_in.append(w_out)
        main_specs.append(pl.BlockSpec(w_out.shape, lambda b, n: (0, 0)))
    bw = (b_W_fold.reshape(C, 1) if cf_out else b_W_fold.reshape(1, C)).astype(jnp.float32)
    main_in.append(bw)
    main_specs.append(pl.BlockSpec(bw.shape, lambda b, n: (0, 0)))

    out_shape = [jax.ShapeDtypeStruct((B, C, N) if cf_out else (B, N, C), x_dt)]
    out_specs = [pl.BlockSpec((1, C, tn), lambda b, n: (b, 0, n)) if cf_out
                 else pl.BlockSpec((1, tn, C), lambda b, n: (b, n, 0))]
    if return_nl_map:
        out_shape.append(jax.ShapeDtypeStruct((B, N, Nsub), nl_map_dtype))
        out_specs.append(pl.BlockSpec((1, tn, Nsub), lambda b, n: (b, n, 0)))

    outs = pl.pallas_call(
        _make_main_kernel(return_nl_map, cf_out, cd),
        out_shape=tuple(out_shape),
        grid_spec=pltpu.PrefetchScalarGridSpec(
            num_scalar_prefetch=0, grid=(B, n_tiles),
            in_specs=main_specs, out_specs=tuple(out_specs)),
        compiler_params=pltpu.CompilerParams(
            dimension_semantics=("parallel", "parallel"),
            vmem_limit_bytes=vmem_budget),
    )(*main_in)

    if return_nl_map:
        z_flat, f_div_c = outs
    else:
        (z_flat,) = outs
        f_div_c = None

    if cf_out:
        z = z_flat.reshape(B, C, H, W)                                  # already channels-first
    else:
        z = jnp.transpose(z_flat.reshape(B, H, W, C), (0, 3, 1, 2))     # NHWC rows -> NCHW
    return (z, f_div_c) if return_nl_map else z


# ---------------- pure-JAX reference (mirrors the PyTorch forward, BN in eval mode) ------------
def reference(x, p, eps=1e-5):
    B, C, H, W = x.shape
    IC = p['w_theta'].shape[1]

    def conv1x1(xin, w, b):
        return jnp.einsum('bchw,cd->bdhw', xin, w) + b.reshape(1, -1, 1, 1)

    def maxpool2(xin):
        return lax.reduce_window(xin, -jnp.inf, lax.max, (1, 1, 2, 2), (1, 1, 2, 2), 'VALID')

    g_x = maxpool2(conv1x1(x, p['w_g'], p['b_g'])).reshape(B, IC, -1).transpose(0, 2, 1)
    theta_x = conv1x1(x, p['w_theta'], p['b_theta']).reshape(B, IC, -1).transpose(0, 2, 1)
    phi_x = maxpool2(conv1x1(x, p['w_phi'], p['b_phi'])).reshape(B, IC, -1)
    f = jnp.matmul(theta_x, phi_x)
    f_div_c = f / f.shape[-1]
    y = jnp.matmul(f_div_c, g_x).transpose(0, 2, 1).reshape(B, IC, H, W)
    w_y = conv1x1(y, p['w_W'], p['b_W'])
    rm = p['running_mean'].reshape(1, -1, 1, 1)
    rv = p['running_var'].reshape(1, -1, 1, 1)
    w_y = (p['gamma'].reshape(1, -1, 1, 1) * (w_y - rm) / jnp.sqrt(rv + eps)
           + p['beta'].reshape(1, -1, 1, 1))
    return w_y + x, f_div_c


def _np(a):
    return np.asarray(jnp.asarray(a, jnp.float32))


def make_params(key, C, IC, wscale):
    ks = jax.random.split(key, 13)
    p = {
        'w_g': jax.random.normal(ks[0], (C, IC), jnp.float32) * wscale,
        'b_g': jax.random.normal(ks[1], (1, IC), jnp.float32) * 0.1,
        'w_theta': jax.random.normal(ks[2], (C, IC), jnp.float32) * wscale,
        'b_theta': jax.random.normal(ks[3], (1, IC), jnp.float32) * 0.1,
        'w_phi': jax.random.normal(ks[4], (C, IC), jnp.float32) * wscale,
        'b_phi': jax.random.normal(ks[5], (1, IC), jnp.float32) * 0.1,
        'w_W': jax.random.normal(ks[6], (IC, C), jnp.float32) * wscale,
        'b_W': jax.random.normal(ks[7], (1, C), jnp.float32) * 0.1,
        # Non-trivial BN affine + running stats so the folded W+BN path is exercised
        # (the PyTorch module inits gamma=beta=0, which would make z == x).
        'gamma': jax.random.normal(ks[8], (1, C), jnp.float32) * 0.5,
        'beta': jax.random.normal(ks[9], (1, C), jnp.float32) * 0.1,
        'running_mean': jax.random.normal(ks[10], (C,), jnp.float32) * 0.1,
        'running_var': 0.5 + jax.random.uniform(ks[11], (C,), jnp.float32),
    }
    return p, ks[12]


if __name__ == "__main__":
    key = jax.random.PRNGKey(0)
    configs = [
        dict(B=2, C=4, H=16, W=16, wscale=0.2),      # C < 128  -> channels-first z path
        dict(B=2, C=128, H=16, W=16, wscale=0.05),   # C >= 128 -> row-major z path
    ]
    for cfg in configs:
        B, C, H, W = cfg['B'], cfg['C'], cfg['H'], cfg['W']
        IC = max(C // 2, 1)
        params, key = make_params(key, C, IC, cfg['wscale'])
        key, kx = jax.random.split(key)
        x = jax.random.normal(kx, (B, C, H, W), jnp.float32)

        z_ref, nl_ref = reference(x, params)

        # Exact-math path (f32 operands, f32 nl_map) — tight tolerance.
        z32, nl32 = nonlocal_block_2d(x, params, return_nl_map=True,
                                      compute_dtype=jnp.float32, nl_map_dtype=jnp.float32)
        jax.block_until_ready((z32, nl32))
        np.testing.assert_allclose(_np(z32), _np(z_ref), rtol=1e-5, atol=1e-5)
        np.testing.assert_allclose(_np(nl32), _np(nl_ref), rtol=1e-5, atol=1e-5)

        # Perf path: bf16 MXU operands, bf16 attention map — loose tolerance.
        z_bf, nl_bf = nonlocal_block_2d(x, params, return_nl_map=True)
        jax.block_until_ready((z_bf, nl_bf))
        np.testing.assert_allclose(_np(z_bf), _np(z_ref), rtol=5e-2, atol=2e-2)
        np.testing.assert_allclose(_np(nl_bf), _np(nl_ref), rtol=5e-2, atol=5e-3)

        # Default path (no attention map): reassociated y = theta @ [(phi^T g) @ W_bn].
        z_only32 = nonlocal_block_2d(x, params, compute_dtype=jnp.float32)
        jax.block_until_ready(z_only32)
        np.testing.assert_allclose(_np(z_only32), _np(z_ref), rtol=1e-4, atol=1e-4)

        z_only = nonlocal_block_2d(x, params)
        jax.block_until_ready(z_only)
        np.testing.assert_allclose(_np(z_only), _np(z_ref), rtol=5e-2, atol=2e-2)

    print("KERNEL_OK")
</pallas_src>

<mosaic_0001>
module attributes {stable_mosaic.version = 11 : i64} {
  func.func @kernel(%arg0: i32, %arg1: memref<1x256x4xf32, #tpu.memory_space<vmem>>, %arg2: memref<2x4x2xf32, #tpu.memory_space<vmem>>, %arg3: memref<2x2xf32, #tpu.memory_space<vmem>>, %arg4: memref<1x64x2xf32, #tpu.memory_space<vmem>>, %arg5: memref<1x2x64xf32, #tpu.memory_space<vmem>>) attributes {dimension_semantics = [#tpu.dimension_semantics<parallel>], iteration_bounds = array<i64: 2>, scalar_prefetch = 0 : i64, scratch_operands = 0 : i64, tpu.core_type = #tpu.core_type<tc>, window_params = [{transform_indices = @transform_0, window_bounds = array<i64: 1, 256, 4>}, {pipeline_mode = #tpu.pipeline_mode<synchronous>, transform_indices = @transform_1, window_bounds = array<i64: 2, 4, 2>}, {pipeline_mode = #tpu.pipeline_mode<synchronous>, transform_indices = @transform_2, window_bounds = array<i64: 2, 2>}, {transform_indices = @transform_3, window_bounds = array<i64: 1, 64, 2>}, {transform_indices = @transform_4, window_bounds = array<i64: 1, 2, 64>}]} {
    %c0 = arith.constant 0 : index
    %c0_0 = arith.constant 0 : index
    %c0_1 = arith.constant 0 : index
    %0 = vector.load %arg1[%c0, %c0_0, %c0_1] : memref<1x256x4xf32, #tpu.memory_space<vmem>>, vector<1x256x4xf32>
    %1 = vector.shape_cast %0 : vector<1x256x4xf32> to vector<256x4xf32>
    %c0_2 = arith.constant 0 : index
    %c0_3 = arith.constant 0 : index
    %c0_4 = arith.constant 0 : index
    %2 = vector.load %arg2[%c0_2, %c0_3, %c0_4] : memref<2x4x2xf32, #tpu.memory_space<vmem>>, vector<1x4x2xf32>
    %3 = vector.shape_cast %2 : vector<1x4x2xf32> to vector<4x2xf32>
    %c0_5 = arith.constant 0 : index
    %c0_6 = arith.constant 0 : index
    %4 = vector.load %arg3[%c0_5, %c0_6] : memref<2x2xf32, #tpu.memory_space<vmem>>, vector<1x2xf32>
    %cst = arith.constant dense<0.000000e+00> : vector<256x2xf32>
    %5 = tpu.matmul %1, %3, %cst {dimension_numbers = #tpu.dot_dimension_numbers<[1], [0], [0], [1], [0, 0, 1, 1], [], []>} : vector<256x4xf32>, vector<4x2xf32>, vector<256x2xf32> -> vector<256x2xf32>
    %6 = vector.broadcast %4 : vector<1x2xf32> to vector<256x2xf32>
    %7 = arith.addf %5, %6 : vector<256x2xf32>
    %8 = vector.extract_strided_slice %7 {offsets = [0, 0], sizes = [64, 2], strides = [1, 1]} : vector<256x2xf32> to vector<64x2xf32>
    %9 = vector.extract_strided_slice %7 {offsets = [64, 0], sizes = [64, 2], strides = [1, 1]} : vector<256x2xf32> to vector<64x2xf32>
    %10 = arith.maximumf %8, %9 : vector<64x2xf32>
    %11 = vector.extract_strided_slice %7 {offsets = [128, 0], sizes = [64, 2], strides = [1, 1]} : vector<256x2xf32> to vector<64x2xf32>
    %12 = vector.extract_strided_slice %7 {offsets = [192, 0], sizes = [64, 2], strides = [1, 1]} : vector<256x2xf32> to vector<64x2xf32>
    %13 = arith.maximumf %11, %12 : vector<64x2xf32>
    %14 = arith.maximumf %10, %13 : vector<64x2xf32>
    %c1 = arith.constant 1 : index
    %c0_7 = arith.constant 0 : index
    %c0_8 = arith.constant 0 : index
    %15 = vector.load %arg2[%c1, %c0_7, %c0_8] : memref<2x4x2xf32, #tpu.memory_space<vmem>>, vector<1x4x2xf32>
    %16 = vector.shape_cast %15 : vector<1x4x2xf32> to vector<4x2xf32>
    %c1_9 = arith.constant 1 : index
    %c0_10 = arith.constant 0 : index
    %17 = vector.load %arg3[%c1_9, %c0_10] : memref<2x2xf32, #tpu.memory_space<vmem>>, vector<1x2xf32>
    %cst_11 = arith.constant dense<0.000000e+00> : vector<256x2xf32>
    %18 = tpu.matmul %1, %16, %cst_11 {dimension_numbers = #tpu.dot_dimension_numbers<[1], [0], [0], [1], [0, 0, 1, 1], [], []>} : vector<256x4xf32>, vector<4x2xf32>, vector<256x2xf32> -> vector<256x2xf32>
    %19 = vector.broadcast %17 : vector<1x2xf32> to vector<256x2xf32>
    %20 = arith.addf %18, %19 : vector<256x2xf32>
    %21 = vector.extract_strided_slice %20 {offsets = [0, 0], sizes = [64, 2], strides = [1, 1]} : vector<256x2xf32> to vector<64x2xf32>
    %22 = vector.extract_strided_slice %20 {offsets = [64, 0], sizes = [64, 2], strides = [1, 1]} : vector<256x2xf32> to vector<64x2xf32>
    %23 = arith.maximumf %21, %22 : vector<64x2xf32>
    %24 = vector.extract_strided_slice %20 {offsets = [128, 0], sizes = [64, 2], strides = [1, 1]} : vector<256x2xf32> to vector<64x2xf32>
    %25 = vector.extract_strided_slice %20 {offsets = [192, 0], sizes = [64, 2], strides = [1, 1]} : vector<256x2xf32> to vector<64x2xf32>
    %26 = arith.maximumf %24, %25 : vector<64x2xf32>
    %27 = arith.maximumf %23, %26 : vector<64x2xf32>
    %c0_12 = arith.constant 0 : index
    %c0_13 = arith.constant 0 : index
    %c0_14 = arith.constant 0 : index
    %28 = vector.load %arg4[%c0_12, %c0_13, %c0_14] : memref<1x64x2xf32, #tpu.memory_space<vmem>>, vector<1x64x2xf32>
    %29 = vector.shape_cast %28 : vector<1x64x2xf32> to vector<64x2xf32>
    %30 = vector.shape_cast %14 : vector<64x2xf32> to vector<1x64x2xf32>
    tpu.vector_store %arg4[%c0_12, %c0_13, %c0_14], %30 {strides = array<i32>} : memref<1x64x2xf32, #tpu.memory_space<vmem>>, vector<1x64x2xf32>,
    %31 = tpu.transpose %27, [1, 0] : vector<64x2xf32> -> vector<2x64xf32>
    %c0_15 = arith.constant 0 : index
    %c0_16 = arith.constant 0 : index
    %c0_17 = arith.constant 0 : index
    %32 = vector.load %arg5[%c0_15, %c0_16, %c0_17] : memref<1x2x64xf32, #tpu.memory_space<vmem>>, vector<1x2x64xf32>
    %33 = vector.shape_cast %32 : vector<1x2x64xf32> to vector<2x64xf32>
    %34 = vector.shape_cast %31 : vector<2x64xf32> to vector<1x2x64xf32>
    tpu.vector_store %arg5[%c0_15, %c0_16, %c0_17], %34 {strides = array<i32>} : memref<1x2x64xf32, #tpu.memory_space<vmem>>, vector<1x2x64xf32>,
    return
  }
  func.func @transform_0(%arg0: i32) -> (i32, i32, i32) {
    %c0_i32 = arith.constant 0 : i32
    %c0_i32_0 = arith.constant 0 : i32
    %c0_i32_1 = arith.constant 0 : i32
    return %arg0, %c0_i32, %c0_i32_0 : i32, i32, i32
  }
  func.func @transform_1(%arg0: i32) -> (i32, i32, i32) {
    %c0_i32 = arith.constant 0 : i32
    %c0_i32_0 = arith.constant 0 : i32
    %c0_i32_1 = arith.constant 0 : i32
    %c0_i32_2 = arith.constant 0 : i32
    return %c0_i32, %c0_i32_0, %c0_i32_1 : i32, i32, i32
  }
  func.func @transform_2(%arg0: i32) -> (i32, i32) {
    %c0_i32 = arith.constant 0 : i32
    %c0_i32_0 = arith.constant 0 : i32
    %c0_i32_1 = arith.constant 0 : i32
    return %c0_i32, %c0_i32_0 : i32, i32
  }
  func.func @transform_3(%arg0: i32) -> (i32, i32, i32) {
    %c0_i32 = arith.constant 0 : i32
    %c0_i32_0 = arith.constant 0 : i32
    %c0_i32_1 = arith.constant 0 : i32
    return %arg0, %c0_i32, %c0_i32_0 : i32, i32, i32
  }
  func.func @transform_4(%arg0: i32) -> (i32, i32, i32) {
    %c0_i32 = arith.constant 0 : i32
    %c0_i32_0 = arith.constant 0 : i32
    %c0_i32_1 = arith.constant 0 : i32
    return %arg0, %c0_i32, %c0_i32_0 : i32, i32, i32
  }
}

</mosaic_0001>

<llo_original>
// kernel: tpu_custom_call.1
$region0: #{tpu_custom_call.1}
  #allocation0 [shape = 'u32[]', space=smem, size = 0x4, offset = 0x4, fixed_abs, tag = 'smem constant byte address 0x4 - core index']
  #allocation1 [shape = 'u32[144,128]{1,0:T(1,128)}', space=vmem, size = 0x12000, scoped, tag = 'internal scratch']
  %s0 = inlined_call_operand.hbm [shape: f32[2,256,4], index: 0, kind: input, shape index: {}]
  %s1 = inlined_call_operand.hbm [shape: f32[2,4,2], index: 1, kind: input, shape index: {}]
  %s2 = inlined_call_operand.hbm [shape: f32[2,2], index: 2, kind: input, shape index: {}]
  %s3 = inlined_call_operand.hbm [shape: f32[2,64,2], index: 3, kind: output, shape index: {0}]
  %s4 = inlined_call_operand.hbm [shape: f32[2,2,64], index: 4, kind: output, shape index: {1}]
  %5 = xla_tuple %s3, %s4
  %s6 = sld [smem:[#allocation0]]
  $region65: #{tpu_custom_call.1} parent=0
    _
  %s8 = ssub.s32 1, %s6
  %s9 = scalar_select 0, %s8, %s6
  $region1: #{tpu_custom_call.1} parent=0
    #allocation2 [shape = 'u8[262144]{0}', space=vmem, size = 0x40000, scoped, tag = 'input window, operand 0']
    #allocation3 [shape = 's32[2]{0}', space=sflag, size = 0x8, scoped, tag = 'scoped memory for tpu_custom_call.1']
    #allocation4 [shape = 's32[2]{0}', space=sflag, size = 0x8, scoped, tag = 'scoped memory for tpu_custom_call.1']
    #allocation5 [shape = 'u8[4096]{0}', space=vmem, size = 0x1000, scoped, tag = 'input window, operand 1, single buffered']
    #allocation6 [shape = 's32[1]{0}', space=sflag, size = 0x4, scoped, tag = 'scoped memory for tpu_custom_call.1']
    #allocation7 [shape = 'u8[1024]{0}', space=vmem, size = 0x400, scoped, tag = 'input window, operand 2, single buffered']
    #allocation8 [shape = 'u8[65536]{0}', space=vmem, size = 0x10000, scoped, tag = 'output window, operand 0']
    #allocation9 [shape = 'u8[2048]{0}', space=vmem, size = 0x800, scoped, tag = 'output window, operand 1']
    #allocation10 [shape = 's32[2]{0}', space=sflag, size = 0x8, scoped, tag = 'scoped memory for tpu_custom_call.1']
    %10 = vsyncpa [#allocation3], 0
    %s11 = scalar_lea.sflag [#allocation3], 1
    %12 = vsyncpa %s11, 0
    %13 = vsyncpa [#allocation6], 0
    %14 = vsyncpa [#allocation4], 0
    %s15 = scalar_lea.sflag [#allocation4], 1
    %16 = vsyncpa %s15, 0
    %17 = vsyncpa [#allocation10], 0
    %s18 = scalar_lea.sflag [#allocation10], 1
    %19 = vsyncpa %s18, 0
    loop: start=0, step=1, limit=4
    $region2: #{tpu_custom_call.1} parent=1 // loop_pre_header
      _
    $region3: #{tpu_custom_call.1} parent=1 // loop_header
      %s21 = sphi 0, %s25
      %p22 = scmp.ge.s32.totalorder %s21, 4
      %s31 = sphi 0, %s33
      %s34 = sphi 0, %s31
      %s35 = sphi 0, %s34
      %s51 = sphi 0, %s35
      %s55 = sphi 0, %s55
      %s57 = sphi 0, %s55
      %s58 = sphi 0, %s57
      %s72 = sphi 0, %s58
      %s76 = sphi 0, %s76
      %s78 = sphi 0, %s76
      %s79 = sphi 0, %s78
      %s93 = sphi 0, %s79
      %s99 = sphi 0, %s101
      %s102 = sphi 0, %s99
      %s103 = sphi 0, %s102
      %s119 = sphi 0, %s103
      %s125 = sphi 0, %s127
      %s128 = sphi 0, %s125
      %s129 = sphi 0, %s128
      %s145 = sphi 0, %s129
    $region4: #{tpu_custom_call.1} parent=1 // loop_header_branch
      %24 = sbr.rel (%p22) target = $region8
    $region5: #{tpu_custom_call.1} parent=1 // loop_body
      %s26 = ssub.s32 %s21, 1
      %s27 = ssub.s32 %s21, 2
      %s28 = sadd.s32 %s21, 1
      %s29 = ssub.s32 %s21, %s28
      %p30 = scmp.eq.s32.totalorder %s29, 0
      %s32 = sadd.s32 %s31, 1
      %s33 = scalar_select %p30, %s31, %s32
      %p36 = pneg %p30
      %p37 = scmp.eq.s32.totalorder %s21, 1
      %p38 = por %p36, %p37
      %p39 = scmp.ne.s32.totalorder %s31, %s34
      %p40 = scmp.eq.s32.totalorder %s21, 0
      %p41 = por %p39, %p40
      %p42 = scmp.ne.s32.totalorder %s31, %s34
      %p43 = scmp.eq.s32.totalorder %s26, 1
      %p44 = por %p42, %p43
      %p45 = scmp.ne.s32.totalorder %s34, %s35
      %p46 = scmp.eq.s32.totalorder %s26, 0
      %p47 = por %p45, %p46
      %p48 = scmp.ne.s32.totalorder %s34, %s35
      %p49 = scmp.eq.s32.totalorder %s27, 1
      %p50 = por %p48, %p49
      %p52 = scmp.ne.s32.totalorder %s35, %s51
      %p53 = scmp.eq.s32.totalorder %s27, 0
      %p54 = por %p52, %p53
      %s56 = sadd.s32 %s55, 1
      %p59 = scmp.eq.s32.totalorder %s21, 1
      %p60 = scmp.ne.s32.totalorder %s55, %s57
      %p61 = scmp.eq.s32.totalorder %s21, 0
      %p62 = por %p60, %p61
      %p63 = scmp.ne.s32.totalorder %s55, %s57
      %p64 = scmp.eq.s32.totalorder %s26, 1
      %p65 = por %p63, %p64
      %p66 = scmp.ne.s32.totalorder %s57, %s58
      %p67 = scmp.eq.s32.totalorder %s26, 0
      %p68 = por %p66, %p67
      %p69 = scmp.ne.s32.totalorder %s57, %s58
      %p70 = scmp.eq.s32.totalorder %s27, 1
      %p71 = por %p69, %p70
      %p73 = scmp.ne.s32.totalorder %s58, %s72
      %p74 = scmp.eq.s32.totalorder %s27, 0
      %p75 = por %p73, %p74
      %s77 = sadd.s32 %s76, 1
      %p80 = scmp.eq.s32.totalorder %s21, 1
      %p81 = scmp.ne.s32.totalorder %s76, %s78
      %p82 = scmp.eq.s32.totalorder %s21, 0
      %p83 = por %p81, %p82
      %p84 = scmp.ne.s32.totalorder %s76, %s78
      %p85 = scmp.eq.s32.totalorder %s26, 1
      %p86 = por %p84, %p85
      %p87 = scmp.ne.s32.totalorder %s78, %s79
      %p88 = scmp.eq.s32.totalorder %s26, 0
      %p89 = por %p87, %p88
      %p90 = scmp.ne.s32.totalorder %s78, %s79
      %p91 = scmp.eq.s32.totalorder %s27, 1
      %p92 = por %p90, %p91
      %p94 = scmp.ne.s32.totalorder %s79, %s93
      %p95 = scmp.eq.s32.totalorder %s27, 0
      %p96 = por %p94, %p95
      %s97 = ssub.s32 %s21, %s28
      %p98 = scmp.eq.s32.totalorder %s97, 0
      %s100 = sadd.s32 %s99, 1
      %s101 = scalar_select %p98, %s99, %s100
      %p104 = pneg %p98
      %p105 = scmp.eq.s32.totalorder %s21, 1
      %p106 = por %p104, %p105
      %p107 = scmp.ne.s32.totalorder %s99, %s102
      %p108 = scmp.eq.s32.totalorder %s21, 0
      %p109 = por %p107, %p108
      %p110 = scmp.ne.s32.totalorder %s99, %s102
      %p111 = scmp.eq.s32.totalorder %s26, 1
      %p112 = por %p110, %p111
      %p113 = scmp.ne.s32.totalorder %s102, %s103
      %p114 = scmp.eq.s32.totalorder %s26, 0
      %p115 = por %p113, %p114
      %p116 = scmp.ne.s32.totalorder %s102, %s103
      %p117 = scmp.eq.s32.totalorder %s27, 1
      %p118 = por %p116, %p117
      %p120 = scmp.ne.s32.totalorder %s103, %s119
      %p121 = scmp.eq.s32.totalorder %s27, 0
      %p122 = por %p120, %p121
      %s123 = ssub.s32 %s21, %s28
      %p124 = scmp.eq.s32.totalorder %s123, 0
      %s126 = sadd.s32 %s125, 1
      %s127 = scalar_select %p124, %s125, %s126
      %p130 = pneg %p124
      %p131 = scmp.eq.s32.totalorder %s21, 1
      %p132 = por %p130, %p131
      %p133 = scmp.ne.s32.totalorder %s125, %s128
      %p134 = scmp.eq.s32.totalorder %s21, 0
      %p135 = por %p133, %p134
      %p136 = scmp.ne.s32.totalorder %s125, %s128
      %p137 = scmp.eq.s32.totalorder %s26, 1
      %p138 = por %p136, %p137
      %p139 = scmp.ne.s32.totalorder %s128, %s129
      %p140 = scmp.eq.s32.totalorder %s26, 0
      %p141 = por %p139, %p140
      %p142 = scmp.ne.s32.totalorder %s128, %s129
      %p143 = scmp.eq.s32.totalorder %s27, 1
      %p144 = por %p142, %p143
      %p146 = scmp.ne.s32.totalorder %s129, %s145
      %p147 = scmp.eq.s32.totalorder %s27, 0
      %p148 = por %p146, %p147
      %p149 = scmp.le.s32.totalorder 1, %s21
      %p150 = scmp.lt.s32.totalorder %s21, 3
      %p151 = pnand %p149, %p150
      %p152 = pneg %p151
      // Predicated region
      $region9: #{tpu_custom_call.1} parent=5 // pred_check
        _
      $region10: #{tpu_custom_call.1} parent=5 // pred_check_branch
        %154 = sbr.rel (%p151) target = $region12
      $region11: #{tpu_custom_call.1} parent=5 // pred_region
        %s155 = ssub.s32 %s21, 1
        // Predicated region
        $region13: #{tpu_custom_call.1} parent=11 // pred_check
          %p156 = pneg %p68
        $region14: #{tpu_custom_call.1} parent=11 // pred_check_branch
          %158 = sbr.rel (%p156) target = $region16
        $region15: #{tpu_custom_call.1} parent=11 // pred_region
          %s160 = ssub.s32 128, 128
          %161 = vsyncadd [#allocation6], %s160
          %s162 = sshll.u32 [#allocation5], 4
          %s163 = int_to_ptr.vmem [resolvable:$true] %s162
          %168 = dma.hbm_to_vmem [thread:$0]  %s1, 128, %s163, [#allocation6], 64, 64, 4
        $region16: #{tpu_custom_call.1} parent=11 // pred_fallthru
          _
        // Predicated region
        $region17: #{tpu_custom_call.1} parent=11 // pred_check
          %p169 = pneg %p89
        $region18: #{tpu_custom_call.1} parent=11 // pred_check_branch
          %171 = sbr.rel (%p169) target = $region20
        $region19: #{tpu_custom_call.1} parent=11 // pred_region
          %s173 = ssub.s32 32, 32
          %174 = vsyncadd [#allocation6], %s173
          %s176 = sshll.u32 [#allocation7], 4
          %s177 = int_to_ptr.vmem [resolvable:$true] %s176
          %179 = dma.hbm_to_vmem [thread:$0]  %s2, 32, %s177, [#allocation6]
        $region20: #{tpu_custom_call.1} parent=11 // pred_fallthru
          _
      $region12: #{tpu_custom_call.1} parent=5 // pred_fallthru
        _
      %p180 = scmp.lt.s32.totalorder %s21, 2
      // Predicated region
      $region21: #{tpu_custom_call.1} parent=5 // pred_check
        %p181 = pneg %p180
      $region22: #{tpu_custom_call.1} parent=5 // pred_check_branch
        %183 = sbr.rel (%p181) target = $region24
      $region23: #{tpu_custom_call.1} parent=5 // pred_region
        // Predicated region
        $region25: #{tpu_custom_call.1} parent=23 // pred_check
          %p184 = pneg %p41
        $region26: #{tpu_custom_call.1} parent=23 // pred_check_branch
          %186 = sbr.rel (%p184) target = $region28
        $region27: #{tpu_custom_call.1} parent=23 // pred_region
          %s187 = sand.u32 %s31, 1
          %s188 = scalar_lea.sflag [#allocation3], %s187
          %s189 = sand.u32 %s31, 1
          %s190 = smul.addr %s189, 256
          %s191 = scalar_lea.vmem [#allocation2], %s190
          %s193 = ssub.s32 4096, 4096
          %194 = vsyncadd %s188, %s193
          %s195 = smul.addr %s21, 32
          %s196 = smul.addr %s195, 128
          %s197 = scalar_lea.hbm %s0, %s196
          %s198 = sshll.u32 %s191, 4
          %s199 = int_to_ptr.vmem [resolvable:$true] %s198
          %204 = dma.hbm_to_vmem [thread:$0]  %s197, 4096, %s199, %s188, 128, 128, 8
        $region28: #{tpu_custom_call.1} parent=23 // pred_fallthru
          _
      $region24: #{tpu_custom_call.1} parent=5 // pred_fallthru
        _
      %p205 = scmp.le.s32.totalorder 1, %s21
      %p206 = scmp.lt.s32.totalorder %s21, 3
      %p207 = pnand %p205, %p206
      %p208 = pneg %p207
      // Predicated region
      $region29: #{tpu_custom_call.1} parent=5 // pred_check
        _
      $region30: #{tpu_custom_call.1} parent=5 // pred_check_branch
        %210 = sbr.rel (%p207) target = $region32
      $region31: #{tpu_custom_call.1} parent=5 // pred_region
        %s211 = ssub.s32 %s21, 1
        %s212 = sand.u32 %s34, 1
        %s213 = scalar_lea.sflag [#allocation3], %s212
        %s214 = sand.u32 %s34, 1
        %s215 = smul.addr %s214, 256
        %s216 = scalar_lea.vmem [#allocation2], %s215
        // Predicated region
        $region33: #{tpu_custom_call.1} parent=31 // pred_check
          %p217 = pneg %p47
        $region34: #{tpu_custom_call.1} parent=31 // pred_check_branch
          %219 = sbr.rel (%p217) target = $region36
        $region35: #{tpu_custom_call.1} parent=31 // pred_region
          %220 = dma.done %s213, 4096
        $region36: #{tpu_custom_call.1} parent=31 // pred_fallthru
          _
        // Predicated region
        $region37: #{tpu_custom_call.1} parent=31 // pred_check
          %p221 = pneg %p68
        $region38: #{tpu_custom_call.1} parent=31 // pred_check_branch
          %223 = sbr.rel (%p221) target = $region40
        $region39: #{tpu_custom_call.1} parent=31 // pred_region
          %224 = dma.done [#allocation6], 128
        $region40: #{tpu_custom_call.1} parent=31 // pred_fallthru
          _
        // Predicated region
        $region41: #{tpu_custom_call.1} parent=31 // pred_check
          %p225 = pneg %p89
        $region42: #{tpu_custom_call.1} parent=31 // pred_check_branch
          %227 = sbr.rel (%p225) target = $region44
        $region43: #{tpu_custom_call.1} parent=31 // pred_region
          %228 = dma.done [#allocation6], 32
        $region44: #{tpu_custom_call.1} parent=31 // pred_fallthru
          _
        %s229 = sand.u32 %s34, 1
        %s230 = scalar_lea.sflag [#allocation3], %s229
        %s231 = sand.u32 %s34, 1
        %s232 = smul.addr %s231, 256
        %s233 = scalar_lea.vmem [#allocation2], %s232
        %p234 = pneg %p47
        %p235 = pneg %p44
        %p236 = pneg %p68
        %p237 = pneg %p65
        %p238 = pneg %p89
        %p239 = pneg %p86
        %p240 = pneg %p115
        %p241 = pneg %p112
        %s242 = sand.u32 %s102, 1
        %s243 = scalar_lea.sflag [#allocation4], %s242
        %s244 = sand.u32 %s102, 1
        %s245 = smul.addr %s244, 64
        %s246 = scalar_lea.vmem [#allocation8], %s245
        %p247 = pneg %p141
        %p248 = pneg %p138
        %s249 = sand.u32 %s128, 1
        %s250 = scalar_lea.sflag [#allocation10], %s249
        %s251 = sand.u32 %s128, 1
        %s252 = smul.addr %s251, 2
        %s253 = scalar_lea.vmem [#allocation9], %s252
        %v254 = vld [vmem:[%s216] sm:$0xff]
        %v255 = vld [vmem:[%s216 + $0x8] sm:$0xff]
        %v256 = vld [vmem:[%s216 + $0x10] sm:$0xff]
        %v257 = vld [vmem:[%s216 + $0x18] sm:$0xff]
        %v258 = vld [vmem:[%s216 + $0x20] sm:$0xff]
        %v259 = vld [vmem:[%s216 + $0x28] sm:$0xff]
        %v260 = vld [vmem:[%s216 + $0x30] sm:$0xff]
        %v261 = vld [vmem:[%s216 + $0x38] sm:$0xff]
        %v262 = vld [vmem:[%s216 + $0x40] sm:$0xff]
        %v263 = vld [vmem:[%s216 + $0x48] sm:$0xff]
        %v264 = vld [vmem:[%s216 + $0x50] sm:$0xff]
        %v265 = vld [vmem:[%s216 + $0x58] sm:$0xff]
        %v266 = vld [vmem:[%s216 + $0x60] sm:$0xff]
        %v267 = vld [vmem:[%s216 + $0x68] sm:$0xff]
        %v268 = vld [vmem:[%s216 + $0x70] sm:$0xff]
        %v269 = vld [vmem:[%s216 + $0x78] sm:$0xff]
        %v270 = vld [vmem:[%s216 + $0x80] sm:$0xff]
        %v271 = vld [vmem:[%s216 + $0x88] sm:$0xff]
        %v272 = vld [vmem:[%s216 + $0x90] sm:$0xff]
        %v273 = vld [vmem:[%s216 + $0x98] sm:$0xff]
        %v274 = vld [vmem:[%s216 + $0xa0] sm:$0xff]
        %v275 = vld [vmem:[%s216 + $0xa8] sm:$0xff]
        %v276 = vld [vmem:[%s216 + $0xb0] sm:$0xff]
        %v277 = vld [vmem:[%s216 + $0xb8] sm:$0xff]
        %v278 = vld [vmem:[%s216 + $0xc0] sm:$0xff]
        %v279 = vld [vmem:[%s216 + $0xc8] sm:$0xff]
        %v280 = vld [vmem:[%s216 + $0xd0] sm:$0xff]
        %v281 = vld [vmem:[%s216 + $0xd8] sm:$0xff]
        %v282 = vld [vmem:[%s216 + $0xe0] sm:$0xff]
        %v283 = vld [vmem:[%s216 + $0xe8] sm:$0xff]
        %v284 = vld [vmem:[%s216 + $0xf0] sm:$0xff]
        %v285 = vld [vmem:[%s216 + $0xf8] sm:$0xff]
        %v286 = vld [vmem:[#allocation5] sm:$0xf]
        %v287 = vld [vmem:[#allocation7] sm:$0x1]
        %v288 = vlaneseq
        %v289 = vshrl.u32 %v288, 7
        %v290 = vsub.s32 0, %v289
        %v291 = vrot.slane %v287, %v290
        %vm292 = vcmask 31744
        %v294 = vsel %vm292, %v254, 0
        %v297 = vsel %vm292, %v255, 0
        %v300 = vsel %vm292, %v256, 0
        %v303 = vsel %vm292, %v257, 0
        %v306 = vsel %vm292, %v258, 0
        %v309 = vsel %vm292, %v259, 0
        %v312 = vsel %vm292, %v260, 0
        %v315 = vsel %vm292, %v261, 0
        %v318 = vsel %vm292, %v262, 0
        %v321 = vsel %vm292, %v263, 0
        %v324 = vsel %vm292, %v264, 0
        %v327 = vsel %vm292, %v265, 0
        %v330 = vsel %vm292, %v266, 0
        %v333 = vsel %vm292, %v267, 0
        %v336 = vsel %vm292, %v268, 0
        %v339 = vsel %vm292, %v269, 0
        %v342 = vsel %vm292, %v270, 0
        %v345 = vsel %vm292, %v271, 0
        %v348 = vsel %vm292, %v272, 0
        %v351 = vsel %vm292, %v273, 0
        %v354 = vsel %vm292, %v274, 0
        %v357 = vsel %vm292, %v275, 0
        %v360 = vsel %vm292, %v276, 0
        %v363 = vsel %vm292, %v277, 0
        %v366 = vsel %vm292, %v278, 0
        %v369 = vsel %vm292, %v279, 0
        %v372 = vsel %vm292, %v280, 0
        %v375 = vsel %vm292, %v281, 0
        %v378 = vsel %vm292, %v282, 0
        %v381 = vsel %vm292, %v283, 0
        %v384 = vsel %vm292, %v284, 0
        %v387 = vsel %vm292, %v285, 0
        %vm389 = vcmask 1043456
        %v391 = vsel %vm389, %v286, 0
        %393 = vmatprep.subr.mxu0 0.0
        %394 = vmatpush1.msra.mxu0 %v391
        %395 = vmatprep.subr.mxu0 0.0
        %396 = vmatpush1.msra.mxu0 0.0
        %397 = vmatprep.subr.mxu0 0.0
        %398 = vmatpush1.msra.mxu0 0.0
        %399 = vmatprep.subr.mxu0 0.0
        %400 = vmatpush1.msra.mxu0 0.0
        %401 = vmatprep.subr.mxu0 0.0
        %402 = vmatpush1.msra.mxu0 0.0
        %403 = vmatprep.subr.mxu0 0.0
        %404 = vmatpush1.msra.mxu0 0.0
        %405 = vmatprep.subr.mxu0 0.0
        %406 = vmatpush1.msra.mxu0 0.0
        %407 = vmatprep.subr.mxu0 0.0
        %408 = vmatpush1.msra.mxu0 0.0
        %409 = vmatprep.subr.mxu0 0.0
        %410 = vmatpush1.msra.mxu0 0.0
        %411 = vmatprep.subr.mxu0 0.0
        %412 = vmatpush1.msra.mxu0 0.0
        %413 = vmatprep.subr.mxu0 0.0
        %414 = vmatpush1.msra.mxu0 0.0
        %415 = vmatprep.subr.mxu0 0.0
        %416 = vmatpush1.msra.mxu0 0.0
        %417 = vmatprep.subr.mxu0 0.0
        %418 = vmatpush1.msra.mxu0 0.0
        %419 = vmatprep.subr.mxu0 0.0
        %420 = vmatpush1.msra.mxu0 0.0
        %421 = vmatprep.subr.mxu0 0.0
        %422 = vmatpush1.msra.mxu0 0.0
        %423 = vmatprep.subr.mxu0 0.0
        %424 = vmatpush1.msra.mxu0 0.0
        %425 = vmatprep.subr.mxu0 0.0
        %426 = vmatpush1.msra.mxu0 0.0
        %427 = vmatprep.subr.mxu0 0.0
        %428 = vmatpush1.msra.mxu0 0.0
        %429 = vmatprep.subr.mxu0 0.0
        %430 = vmatpush1.msra.mxu0 0.0
        %431 = vmatprep.subr.mxu0 0.0
        %432 = vmatpush1.msra.mxu0 0.0
        %433 = vmatprep.subr.mxu0 0.0
        %434 = vmatpush1.msra.mxu0 0.0
        %435 = vmatprep.subr.mxu0 0.0
        %436 = vmatpush1.msra.mxu0 0.0
        %437 = vmatprep.subr.mxu0 0.0
        %438 = vmatpush1.msra.mxu0 0.0
        %439 = vmatprep.subr.mxu0 0.0
        %440 = vmatpush1.msra.mxu0 0.0
        %441 = vmatprep.subr.mxu0 0.0
        %442 = vmatpush1.msra.mxu0 0.0
        %443 = vmatprep.subr.mxu0 0.0
        %444 = vmatpush1.msra.mxu0 0.0
        %445 = vmatprep.subr.mxu0 0.0
        %446 = vmatpush1.msra.mxu0 0.0
        %447 = vmatprep.subr.mxu0 0.0
        %448 = vmatpush1.msra.mxu0 0.0
        %449 = vmatprep.subr.mxu0 0.0
        %450 = vmatpush1.msra.mxu0 0.0
        %451 = vmatprep.subr.mxu0 0.0
        %452 = vmatpush1.msra.mxu0 0.0
        %453 = vmatprep.subr.mxu0 0.0
        %454 = vmatpush1.msra.mxu0 0.0
        %455 = vmatprep.subr.mxu0 0.0
        %456 = vmatpush1.msra.mxu0 0.0
        %457 = vmatprep.mubr.f32.mxu0 0.0
        %458 = vmatmul.mubr.f32.gmra.mrb[0].mxu0 %v294
        %v459 = vpop.f32.mrb[0].mxu0
        %v460 = vadd.f32 %v291, %v459
        %v461 = vpop.f32.mrb[0].mxu0
        %462 = vmatprep.mubr.f32.mxu0 0.0
        %463 = vmatmul.mubr.f32.gmra.mrb[0].mxu0 %v297
        %v464 = vpop.f32.mrb[0].mxu0
        %v465 = vadd.f32 %v291, %v464
        %v466 = vpop.f32.mrb[0].mxu0
        %467 = vmatprep.mubr.f32.mxu0 0.0
        %468 = vmatmul.mubr.f32.gmra.mrb[0].mxu0 %v300
        %v469 = vpop.f32.mrb[0].mxu0
        %v470 = vadd.f32 %v291, %v469
        %v471 = vpop.f32.mrb[0].mxu0
        %472 = vmatprep.mubr.f32.mxu0 0.0
        %473 = vmatmul.mubr.f32.gmra.mrb[0].mxu0 %v303
        %v474 = vpop.f32.mrb[0].mxu0
        %v475 = vadd.f32 %v291, %v474
        %v476 = vpop.f32.mrb[0].mxu0
        %477 = vmatprep.mubr.f32.mxu0 0.0
        %478 = vmatmul.mubr.f32.gmra.mrb[0].mxu0 %v306
        %v479 = vpop.f32.mrb[0].mxu0
        %v480 = vadd.f32 %v291, %v479
        %v481 = vpop.f32.mrb[0].mxu0
        %482 = vmatprep.mubr.f32.mxu0 0.0
        %483 = vmatmul.mubr.f32.gmra.mrb[0].mxu0 %v309
        %v484 = vpop.f32.mrb[0].mxu0
        %v485 = vadd.f32 %v291, %v484
        %v486 = vpop.f32.mrb[0].mxu0
        %487 = vmatprep.mubr.f32.mxu0 0.0
        %488 = vmatmul.mubr.f32.gmra.mrb[0].mxu0 %v312
        %v489 = vpop.f32.mrb[0].mxu0
        %v490 = vadd.f32 %v291, %v489
        %v491 = vpop.f32.mrb[0].mxu0
        %492 = vmatprep.mubr.f32.mxu0 0.0
        %493 = vmatmul.mubr.f32.gmra.mrb[0].mxu0 %v315
        %v494 = vpop.f32.mrb[0].mxu0
        %v495 = vadd.f32 %v291, %v494
        %v496 = vpop.f32.mrb[0].mxu0
        %497 = vmatprep.mubr.f32.mxu0 0.0
        %498 = vmatmul.mubr.f32.gmra.mrb[0].mxu0 %v318
        %v499 = vpop.f32.mrb[0].mxu0
        %v500 = vadd.f32 %v291, %v499
        %v501 = vpop.f32.mrb[0].mxu0
        %502 = vmatprep.mubr.f32.mxu0 0.0
        %503 = vmatmul.mubr.f32.gmra.mrb[0].mxu0 %v321
        %v504 = vpop.f32.mrb[0].mxu0
        %v505 = vadd.f32 %v291, %v504
        %v506 = vpop.f32.mrb[0].mxu0
        %507 = vmatprep.mubr.f32.mxu0 0.0
        %508 = vmatmul.mubr.f32.gmra.mrb[0].mxu0 %v324
        %v509 = vpop.f32.mrb[0].mxu0
        %v510 = vadd.f32 %v291, %v509
        %v511 = vpop.f32.mrb[0].mxu0
        %512 = vmatprep.mubr.f32.mxu0 0.0
        %513 = vmatmul.mubr.f32.gmra.mrb[0].mxu0 %v327
        %v514 = vpop.f32.mrb[0].mxu0
        %v515 = vadd.f32 %v291, %v514
        %v516 = vpop.f32.mrb[0].mxu0
        %517 = vmatprep.mubr.f32.mxu0 0.0
        %518 = vmatmul.mubr.f32.gmra.mrb[0].mxu0 %v330
        %v519 = vpop.f32.mrb[0].mxu0
        %v520 = vadd.f32 %v291, %v519
        %v521 = vpop.f32.mrb[0].mxu0
        %522 = vmatprep.mubr.f32.mxu0 0.0
        %523 = vmatmul.mubr.f32.gmra.mrb[0].mxu0 %v333
        %v524 = vpop.f32.mrb[0].mxu0
        %v525 = vadd.f32 %v291, %v524
        %v526 = vpop.f32.mrb[0].mxu0
        %527 = vmatprep.mubr.f32.mxu0 0.0
        %528 = vmatmul.mubr.f32.gmra.mrb[0].mxu0 %v336
        %v529 = vpop.f32.mrb[0].mxu0
        %v530 = vadd.f32 %v291, %v529
        %v531 = vpop.f32.mrb[0].mxu0
        %532 = vmatprep.mubr.f32.mxu0 0.0
        %533 = vmatmul.mubr.f32.gmra.mrb[0].mxu0 %v339
        %v534 = vpop.f32.mrb[0].mxu0
        %v535 = vadd.f32 %v291, %v534
        %v536 = vpop.f32.mrb[0].mxu0
        %537 = vmatprep.mubr.f32.mxu0 0.0
        %538 = vmatmul.mubr.f32.gmra.mrb[0].mxu0 %v342
        %v539 = vpop.f32.mrb[0].mxu0
        %v540 = vadd.f32 %v291, %v539
        %v541 = vpop.f32.mrb[0].mxu0
        %542 = vmatprep.mubr.f32.mxu0 0.0
        %543 = vmatmul.mubr.f32.gmra.mrb[0].mxu0 %v345
        %v544 = vpop.f32.mrb[0].mxu0
        %v545 = vadd.f32 %v291, %v544
        %v546 = vpop.f32.mrb[0].mxu0
        %547 = vmatprep.mubr.f32.mxu0 0.0
        %548 = vmatmul.mubr.f32.gmra.mrb[0].mxu0 %v348
        %v549 = vpop.f32.mrb[0].mxu0
        %v550 = vadd.f32 %v291, %v549
        %v551 = vpop.f32.mrb[0].mxu0
        %552 = vmatprep.mubr.f32.mxu0 0.0
        %553 = vmatmul.mubr.f32.gmra.mrb[0].mxu0 %v351
        %v554 = vpop.f32.mrb[0].mxu0
        %v555 = vadd.f32 %v291, %v554
        %v556 = vpop.f32.mrb[0].mxu0
        %557 = vmatprep.mubr.f32.mxu0 0.0
        %558 = vmatmul.mubr.f32.gmra.mrb[0].mxu0 %v354
        %v559 = vpop.f32.mrb[0].mxu0
        %v560 = vadd.f32 %v291, %v559
        %v561 = vpop.f32.mrb[0].mxu0
        %562 = vmatprep.mubr.f32.mxu0 0.0
        %563 = vmatmul.mubr.f32.gmra.mrb[0].mxu0 %v357
        %v564 = vpop.f32.mrb[0].mxu0
        %v565 = vadd.f32 %v291, %v564
        %v566 = vpop.f32.mrb[0].mxu0
        %567 = vmatprep.mubr.f32.mxu0 0.0
        %568 = vmatmul.mubr.f32.gmra.mrb[0].mxu0 %v360
        %v569 = vpop.f32.mrb[0].mxu0
        %v570 = vadd.f32 %v291, %v569
        %v571 = vpop.f32.mrb[0].mxu0
        %572 = vmatprep.mubr.f32.mxu0 0.0
        %573 = vmatmul.mubr.f32.gmra.mrb[0].mxu0 %v363
        %v574 = vpop.f32.mrb[0].mxu0
        %v575 = vadd.f32 %v291, %v574
        %v576 = vpop.f32.mrb[0].mxu0
        %577 = vmatprep.mubr.f32.mxu0 0.0
        %578 = vmatmul.mubr.f32.gmra.mrb[0].mxu0 %v366
        %v579 = vpop.f32.mrb[0].mxu0
        %v580 = vadd.f32 %v291, %v579
        %v581 = vpop.f32.mrb[0].mxu0
        %582 = vmatprep.mubr.f32.mxu0 0.0
        %583 = vmatmul.mubr.f32.gmra.mrb[0].mxu0 %v369
        %v584 = vpop.f32.mrb[0].mxu0
        %v585 = vadd.f32 %v291, %v584
        %v586 = vpop.f32.mrb[0].mxu0
        %587 = vmatprep.mubr.f32.mxu0 0.0
        %588 = vmatmul.mubr.f32.gmra.mrb[0].mxu0 %v372
        %v589 = vpop.f32.mrb[0].mxu0
        %v590 = vadd.f32 %v291, %v589
        %v591 = vpop.f32.mrb[0].mxu0
        %592 = vmatprep.mubr.f32.mxu0 0.0
        %593 = vmatmul.mubr.f32.gmra.mrb[0].mxu0 %v375
        %v594 = vpop.f32.mrb[0].mxu0
        %v595 = vadd.f32 %v291, %v594
        %v596 = vpop.f32.mrb[0].mxu0
        %597 = vmatprep.mubr.f32.mxu0 0.0
        %598 = vmatmul.mubr.f32.gmra.mrb[0].mxu0 %v378
        %v599 = vpop.f32.mrb[0].mxu0
        %v600 = vadd.f32 %v291, %v599
        %v601 = vpop.f32.mrb[0].mxu0
        %602 = vmatprep.mubr.f32.mxu0 0.0
        %603 = vmatmul.mubr.f32.gmra.mrb[0].mxu0 %v381
        %v604 = vpop.f32.mrb[0].mxu0
        %v605 = vadd.f32 %v291, %v604
        %v606 = vpop.f32.mrb[0].mxu0
        %607 = vmatprep.mubr.f32.mxu0 0.0
        %608 = vmatmul.mubr.f32.gmra.mrb[0].mxu0 %v384
        %v609 = vpop.f32.mrb[0].mxu0
        %v610 = vadd.f32 %v291, %v609
        %v611 = vpop.f32.mrb[0].mxu0
        %612 = vmatprep.mubr.f32.mxu0 0.0
        %613 = vmatmul.mubr.f32.gmra.mrb[0].mxu0 %v387
        %v614 = vpop.f32.mrb[0].mxu0
        %v615 = vadd.f32 %v291, %v614
        %v616 = vpop.f32.mrb[0].mxu0
        %617 = vdwg.mxu0
        %v618 = vmax.f32 %v460, %v500
        %v619 = vmax.f32 %v465, %v505
        %v620 = vmax.f32 %v470, %v510
        %v621 = vmax.f32 %v475, %v515
        %v622 = vmax.f32 %v480, %v520
        %v623 = vmax.f32 %v485, %v525
        %v624 = vmax.f32 %v490, %v530
        %v625 = vmax.f32 %v495, %v535
        %v626 = vmax.f32 %v540, %v580
        %v627 = vmax.f32 %v545, %v585
        %v628 = vmax.f32 %v550, %v590
        %v629 = vmax.f32 %v555, %v595
        %v630 = vmax.f32 %v560, %v600
        %v631 = vmax.f32 %v565, %v605
        %v632 = vmax.f32 %v570, %v610
        %v633 = vmax.f32 %v575, %v615
        %v634 = vmax.f32 %v618, %v626
        %v635 = vmax.f32 %v619, %v627
        %v636 = vmax.f32 %v620, %v628
        %v637 = vmax.f32 %v621, %v629
        %v638 = vmax.f32 %v622, %v630
        %v639 = vmax.f32 %v623, %v631
        %v640 = vmax.f32 %v624, %v632
        %v641 = vmax.f32 %v625, %v633
        %s642 = scalar_lea.vmem [#allocation5], 4
        %v643 = vld [vmem:[%s642] sm:$0xf]
        %v644 = vld [vmem:[#allocation7 + $0x1] sm:$0x1]
        %v645 = vlaneseq
        %v646 = vshrl.u32 %v645, 7
        %v647 = vsub.s32 0, %v646
        %v648 = vrot.slane %v644, %v647
        %v650 = vsel %vm389, %v643, 0
        %652 = vmatprep.subr.mxu0 0.0
        %653 = vmatpush1.msra.mxu0 %v650
        %654 = vmatprep.subr.mxu0 0.0
        %655 = vmatpush1.msra.mxu0 0.0
        %656 = vmatprep.subr.mxu0 0.0
        %657 = vmatpush1.msra.mxu0 0.0
        %658 = vmatprep.subr.mxu0 0.0
        %659 = vmatpush1.msra.mxu0 0.0
        %660 = vmatprep.subr.mxu0 0.0
        %661 = vmatpush1.msra.mxu0 0.0
        %662 = vmatprep.subr.mxu0 0.0
        %663 = vmatpush1.msra.mxu0 0.0
        %664 = vmatprep.subr.mxu0 0.0
        %665 = vmatpush1.msra.mxu0 0.0
        %666 = vmatprep.subr.mxu0 0.0
        %667 = vmatpush1.msra.mxu0 0.0
        %668 = vmatprep.subr.mxu0 0.0
        %669 = vmatpush1.msra.mxu0 0.0
        %670 = vmatprep.subr.mxu0 0.0
        %671 = vmatpush1.msra.mxu0 0.0
        %672 = vmatprep.subr.mxu0 0.0
        %673 = vmatpush1.msra.mxu0 0.0
        %674 = vmatprep.subr.mxu0 0.0
        %675 = vmatpush1.msra.mxu0 0.0
        %676 = vmatprep.subr.mxu0 0.0
        %677 = vmatpush1.msra.mxu0 0.0
        %678 = vmatprep.subr.mxu0 0.0
        %679 = vmatpush1.msra.mxu0 0.0
        %680 = vmatprep.subr.mxu0 0.0
        %681 = vmatpush1.msra.mxu0 0.0
        %682 = vmatprep.subr.mxu0 0.0
        %683 = vmatpush1.msra.mxu0 0.0
        %684 = vmatprep.subr.mxu0 0.0
        %685 = vmatpush1.msra.mxu0 0.0
        %686 = vmatprep.subr.mxu0 0.0
        %687 = vmatpush1.msra.mxu0 0.0
        %688 = vmatprep.subr.mxu0 0.0
        %689 = vmatpush1.msra.mxu0 0.0
        %690 = vmatprep.subr.mxu0 0.0
        %691 = vmatpush1.msra.mxu0 0.0
        %692 = vmatprep.subr.mxu0 0.0
        %693 = vmatpush1.msra.mxu0 0.0
        %694 = vmatprep.subr.mxu0 0.0
        %695 = vmatpush1.msra.mxu0 0.0
        %696 = vmatprep.subr.mxu0 0.0
        %697 = vmatpush1.msra.mxu0 0.0
        %698 = vmatprep.subr.mxu0 0.0
        %699 = vmatpush1.msra.mxu0 0.0
        %700 = vmatprep.subr.mxu0 0.0
        %701 = vmatpush1.msra.mxu0 0.0
        %702 = vmatprep.subr.mxu0 0.0
        %703 = vmatpush1.msra.mxu0 0.0
        %704 = vmatprep.subr.mxu0 0.0
        %705 = vmatpush1.msra.mxu0 0.0
        %706 = vmatprep.subr.mxu0 0.0
        %707 = vmatpush1.msra.mxu0 0.0
        %708 = vmatprep.subr.mxu0 0.0
        %709 = vmatpush1.msra.mxu0 0.0
        %710 = vmatprep.subr.mxu0 0.0
        %711 = vmatpush1.msra.mxu0 0.0
        %712 = vmatprep.subr.mxu0 0.0
        %713 = vmatpush1.msra.mxu0 0.0
        %714 = vmatprep.subr.mxu0 0.0
        %715 = vmatpush1.msra.mxu0 0.0
        %716 = vmatprep.mubr.f32.mxu0 0.0
        %717 = vmatmul.mubr.f32.gmra.mrb[0].mxu0 %v294
        %v718 = vpop.f32.mrb[0].mxu0
        %v719 = vadd.f32 %v648, %v718
        %v720 = vpop.f32.mrb[0].mxu0
        %721 = vmatprep.mubr.f32.mxu0 0.0
        %722 = vmatmul.mubr.f32.gmra.mrb[0].mxu0 %v297
        %v723 = vpop.f32.mrb[0].mxu0
        %v724 = vadd.f32 %v648, %v723
        %v725 = vpop.f32.mrb[0].mxu0
        %726 = vmatprep.mubr.f32.mxu0 0.0
        %727 = vmatmul.mubr.f32.gmra.mrb[0].mxu0 %v300
        %v728 = vpop.f32.mrb[0].mxu0
        %v729 = vadd.f32 %v648, %v728
        %v730 = vpop.f32.mrb[0].mxu0
        %731 = vmatprep.mubr.f32.mxu0 0.0
        %732 = vmatmul.mubr.f32.gmra.mrb[0].mxu0 %v303
        %v733 = vpop.f32.mrb[0].mxu0
        %v734 = vadd.f32 %v648, %v733
        %v735 = vpop.f32.mrb[0].mxu0
        %736 = vmatprep.mubr.f32.mxu0 0.0
        %737 = vmatmul.mubr.f32.gmra.mrb[0].mxu0 %v306
        %v738 = vpop.f32.mrb[0].mxu0
        %v739 = vadd.f32 %v648, %v738
        %v740 = vpop.f32.mrb[0].mxu0
        %741 = vmatprep.mubr.f32.mxu0 0.0
        %742 = vmatmul.mubr.f32.gmra.mrb[0].mxu0 %v309
        %v743 = vpop.f32.mrb[0].mxu0
        %v744 = vadd.f32 %v648, %v743
        %v745 = vpop.f32.mrb[0].mxu0
        %746 = vmatprep.mubr.f32.mxu0 0.0
        %747 = vmatmul.mubr.f32.gmra.mrb[0].mxu0 %v312
        %v748 = vpop.f32.mrb[0].mxu0
        %v749 = vadd.f32 %v648, %v748
        %v750 = vpop.f32.mrb[0].mxu0
        %751 = vmatprep.mubr.f32.mxu0 0.0
        %752 = vmatmul.mubr.f32.gmra.mrb[0].mxu0 %v315
        %v753 = vpop.f32.mrb[0].mxu0
        %v754 = vadd.f32 %v648, %v753
        %v755 = vpop.f32.mrb[0].mxu0
        %756 = vmatprep.mubr.f32.mxu0 0.0
        %757 = vmatmul.mubr.f32.gmra.mrb[0].mxu0 %v318
        %v758 = vpop.f32.mrb[0].mxu0
        %v759 = vadd.f32 %v648, %v758
        %v760 = vpop.f32.mrb[0].mxu0
        %761 = vmatprep.mubr.f32.mxu0 0.0
        %762 = vmatmul.mubr.f32.gmra.mrb[0].mxu0 %v321
        %v763 = vpop.f32.mrb[0].mxu0
        %v764 = vadd.f32 %v648, %v763
        %v765 = vpop.f32.mrb[0].mxu0
        %766 = vmatprep.mubr.f32.mxu0 0.0
        %767 = vmatmul.mubr.f32.gmra.mrb[0].mxu0 %v324
        %v768 = vpop.f32.mrb[0].mxu0
        %v769 = vadd.f32 %v648, %v768
        %v770 = vpop.f32.mrb[0].mxu0
        %771 = vmatprep.mubr.f32.mxu0 0.0
        %772 = vmatmul.mubr.f32.gmra.mrb[0].mxu0 %v327
        %v773 = vpop.f32.mrb[0].mxu0
        %v774 = vadd.f32 %v648, %v773
        %v775 = vpop.f32.mrb[0].mxu0
        %776 = vmatprep.mubr.f32.mxu0 0.0
        %777 = vmatmul.mubr.f32.gmra.mrb[0].mxu0 %v330
        %v778 = vpop.f32.mrb[0].mxu0
        %v779 = vadd.f32 %v648, %v778
        %v780 = vpop.f32.mrb[0].mxu0
        %781 = vmatprep.mubr.f32.mxu0 0.0
        %782 = vmatmul.mubr.f32.gmra.mrb[0].mxu0 %v333
        %v783 = vpop.f32.mrb[0].mxu0
        %v784 = vadd.f32 %v648, %v783
        %v785 = vpop.f32.mrb[0].mxu0
        %786 = vmatprep.mubr.f32.mxu0 0.0
        %787 = vmatmul.mubr.f32.gmra.mrb[0].mxu0 %v336
        %v788 = vpop.f32.mrb[0].mxu0
        %v789 = vadd.f32 %v648, %v788
        %v790 = vpop.f32.mrb[0].mxu0
        %791 = vmatprep.mubr.f32.mxu0 0.0
        %792 = vmatmul.mubr.f32.gmra.mrb[0].mxu0 %v339
        %v793 = vpop.f32.mrb[0].mxu0
        %v794 = vadd.f32 %v648, %v793
        %v795 = vpop.f32.mrb[0].mxu0
        %796 = vmatprep.mubr.f32.mxu0 0.0
        %797 = vmatmul.mubr.f32.gmra.mrb[0].mxu0 %v342
        %v798 = vpop.f32.mrb[0].mxu0
        %v799 = vadd.f32 %v648, %v798
        %v800 = vpop.f32.mrb[0].mxu0
        %801 = vmatprep.mubr.f32.mxu0 0.0
        %802 = vmatmul.mubr.f32.gmra.mrb[0].mxu0 %v345
        %v803 = vpop.f32.mrb[0].mxu0
        %v804 = vadd.f32 %v648, %v803
        %v805 = vpop.f32.mrb[0].mxu0
        %806 = vmatprep.mubr.f32.mxu0 0.0
        %807 = vmatmul.mubr.f32.gmra.mrb[0].mxu0 %v348
        %v808 = vpop.f32.mrb[0].mxu0
        %v809 = vadd.f32 %v648, %v808
        %v810 = vpop.f32.mrb[0].mxu0
        %811 = vmatprep.mubr.f32.mxu0 0.0
        %812 = vmatmul.mubr.f32.gmra.mrb[0].mxu0 %v351
        %v813 = vpop.f32.mrb[0].mxu0
        %v814 = vadd.f32 %v648, %v813
        %v815 = vpop.f32.mrb[0].mxu0
        %816 = vmatprep.mubr.f32.mxu0 0.0
        %817 = vmatmul.mubr.f32.gmra.mrb[0].mxu0 %v354
        %v818 = vpop.f32.mrb[0].mxu0
        %v819 = vadd.f32 %v648, %v818
        %v820 = vpop.f32.mrb[0].mxu0
        %821 = vmatprep.mubr.f32.mxu0 0.0
        %822 = vmatmul.mubr.f32.gmra.mrb[0].mxu0 %v357
        %v823 = vpop.f32.mrb[0].mxu0
        %v824 = vadd.f32 %v648, %v823
        %v825 = vpop.f32.mrb[0].mxu0
        %826 = vmatprep.mubr.f32.mxu0 0.0
        %827 = vmatmul.mubr.f32.gmra.mrb[0].mxu0 %v360
        %v828 = vpop.f32.mrb[0].mxu0
        %v829 = vadd.f32 %v648, %v828
        %v830 = vpop.f32.mrb[0].mxu0
        %831 = vmatprep.mubr.f32.mxu0 0.0
        %832 = vmatmul.mubr.f32.gmra.mrb[0].mxu0 %v363
        %v833 = vpop.f32.mrb[0].mxu0
        %v834 = vadd.f32 %v648, %v833
        %v835 = vpop.f32.mrb[0].mxu0
        %836 = vmatprep.mubr.f32.mxu0 0.0
        %837 = vmatmul.mubr.f32.gmra.mrb[0].mxu0 %v366
        %v838 = vpop.f32.mrb[0].mxu0
        %v839 = vadd.f32 %v648, %v838
        %v840 = vpop.f32.mrb[0].mxu0
        %841 = vmatprep.mubr.f32.mxu0 0.0
        %842 = vmatmul.mubr.f32.gmra.mrb[0].mxu0 %v369
        %v843 = vpop.f32.mrb[0].mxu0
        %v844 = vadd.f32 %v648, %v843
        %v845 = vpop.f32.mrb[0].mxu0
        %846 = vmatprep.mubr.f32.mxu0 0.0
        %847 = vmatmul.mubr.f32.gmra.mrb[0].mxu0 %v372
        %v848 = vpop.f32.mrb[0].mxu0
        %v849 = vadd.f32 %v648, %v848
        %v850 = vpop.f32.mrb[0].mxu0
        %851 = vmatprep.mubr.f32.mxu0 0.0
        %852 = vmatmul.mubr.f32.gmra.mrb[0].mxu0 %v375
        %v853 = vpop.f32.mrb[0].mxu0
        %v854 = vadd.f32 %v648, %v853
        %v855 = vpop.f32.mrb[0].mxu0
        %856 = vmatprep.mubr.f32.mxu0 0.0
        %857 = vmatmul.mubr.f32.gmra.mrb[0].mxu0 %v378
        %v858 = vpop.f32.mrb[0].mxu0
        %v859 = vadd.f32 %v648, %v858
        %v860 = vpop.f32.mrb[0].mxu0
        %861 = vmatprep.mubr.f32.mxu0 0.0
        %862 = vmatmul.mubr.f32.gmra.mrb[0].mxu0 %v381
        %v863 = vpop.f32.mrb[0].mxu0
        %v864 = vadd.f32 %v648, %v863
        %v865 = vpop.f32.mrb[0].mxu0
        %866 = vmatprep.mubr.f32.mxu0 0.0
        %867 = vmatmul.mubr.f32.gmra.mrb[0].mxu0 %v384
        %v868 = vpop.f32.mrb[0].mxu0
        %v869 = vadd.f32 %v648, %v868
        %v870 = vpop.f32.mrb[0].mxu0
        %871 = vmatprep.mubr.f32.mxu0 0.0
        %872 = vmatmul.mubr.f32.gmra.mrb[0].mxu0 %v387
        %v873 = vpop.f32.mrb[0].mxu0
        %v874 = vadd.f32 %v648, %v873
        %v875 = vpop.f32.mrb[0].mxu0
        %876 = vdwg.mxu0
        %v877 = vmax.f32 %v719, %v759
        %v878 = vmax.f32 %v724, %v764
        %v879 = vmax.f32 %v729, %v769
        %v880 = vmax.f32 %v734, %v774
        %v881 = vmax.f32 %v739, %v779
        %v882 = vmax.f32 %v744, %v784
        %v883 = vmax.f32 %v749, %v789
        %v884 = vmax.f32 %v754, %v794
        %v885 = vmax.f32 %v799, %v839
        %v886 = vmax.f32 %v804, %v844
        %v887 = vmax.f32 %v809, %v849
        %v888 = vmax.f32 %v814, %v854
        %v889 = vmax.f32 %v819, %v859
        %v890 = vmax.f32 %v824, %v864
        %v891 = vmax.f32 %v829, %v869
        %v892 = vmax.f32 %v834, %v874
        %v893 = vmax.f32 %v877, %v885
        %v894 = vmax.f32 %v878, %v886
        %v895 = vmax.f32 %v879, %v887
        %v896 = vmax.f32 %v880, %v888
        %v897 = vmax.f32 %v881, %v889
        %v898 = vmax.f32 %v882, %v890
        %v899 = vmax.f32 %v883, %v891
        %v900 = vmax.f32 %v884, %v892
        %vm901 = vcmask 15360
        %902 = vst.msk [vmem:[%s246] sm:$0xff] %vm901, %v634
        %903 = vst.msk [vmem:[%s246 + $0x8] sm:$0xff] %vm901, %v635
        %904 = vst.msk [vmem:[%s246 + $0x10] sm:$0xff] %vm901, %v636
        %905 = vst.msk [vmem:[%s246 + $0x18] sm:$0xff] %vm901, %v637
        %906 = vst.msk [vmem:[%s246 + $0x20] sm:$0xff] %vm901, %v638
        %907 = vst.msk [vmem:[%s246 + $0x28] sm:$0xff] %vm901, %v639
        %908 = vst.msk [vmem:[%s246 + $0x30] sm:$0xff] %vm901, %v640
        %909 = vst.msk [vmem:[%s246 + $0x38] sm:$0xff] %vm901, %v641
        %910 = vxpose.xlu0.b32.start [1/16] %v893, 128
        %911 = vxpose.xlu0.b32.cont [2/16] %v894, 128
        %912 = vxpose.xlu0.b32.cont [3/16] %v895, 128
        %913 = vxpose.xlu0.b32.cont [4/16] %v896, 128
        %914 = vxpose.xlu0.b32.cont [5/16] %v897, 128
        %915 = vxpose.xlu0.b32.cont [6/16] %v898, 128
        %916 = vxpose.xlu0.b32.cont [7/16] %v899, 128
        %917 = vxpose.xlu0.b32.cont [8/16] %v900, 128
        %918 = vxpose.xlu0.b32.cont [9/16] 0.0, 128
        %919 = vxpose.xlu0.b32.cont [10/16] 0.0, 128
        %920 = vxpose.xlu0.b32.cont [11/16] 0.0, 128
        %921 = vxpose.xlu0.b32.cont [12/16] 0.0, 128
        %922 = vxpose.xlu0.b32.cont [13/16] 0.0, 128
        %923 = vxpose.xlu0.b32.cont [14/16] 0.0, 128
        %924 = vxpose.xlu0.b32.cont [15/16] 0.0, 128
        %925 = vxpose.xlu0.b32.end [16/16] 0.0, 128
        %v926 = vpop.trf.xlu0
        %v927 = vpop.trf.xlu0
        %v928 = vpop.trf.xlu0
        %v929 = vpop.trf.xlu0
        %v930 = vpop.trf.xlu0
        %v931 = vpop.trf.xlu0
        %v932 = vpop.trf.xlu0
        %v933 = vpop.trf.xlu0
        %v934 = vpop.trf.xlu0
        %v935 = vpop.trf.xlu0
        %v936 = vpop.trf.xlu0
        %v937 = vpop.trf.xlu0
        %v938 = vpop.trf.xlu0
        %v939 = vpop.trf.xlu0
        %v940 = vpop.trf.xlu0
        %v941 = vpop.trf.xlu0
        %vm942 = vcmask 517120
        %943 = vst.msk [vmem:[%s253] sm:$0x3] %vm942, %v926
        %s944 = sand.u32 %s102, 1
        %s945 = scalar_lea.sflag [#allocation4], %s944
        %s946 = sand.u32 %s102, 1
        %s947 = smul.addr %s946, 64
        %s948 = scalar_lea.vmem [#allocation8], %s947
        %s949 = sand.u32 %s128, 1
        %s950 = scalar_lea.sflag [#allocation10], %s949
        %s951 = sand.u32 %s128, 1
        %s952 = smul.addr %s951, 2
        %s953 = scalar_lea.vmem [#allocation9], %s952
        // Predicated region
        $region45: #{tpu_custom_call.1} parent=31 // pred_check
          %p954 = pneg %p112
        $region46: #{tpu_custom_call.1} parent=31 // pred_check_branch
          %956 = sbr.rel (%p954) target = $region48
        $region47: #{tpu_custom_call.1} parent=31 // pred_region
          %s958 = ssub.s32 1024, 1024
          %959 = vsyncadd %s945, %s958
          %s960 = smul.addr %s26, 8
          %s961 = smul.addr %s960, 128
          %s962 = scalar_lea.hbm %s3, %s961
          %s963 = sshll.u32 %s948, 4
          %s964 = int_to_ptr.vmem [resolvable:$true] %s963
          %969 = dma.vmem_to_hbm [thread:$0]  %s964, 1024, %s962, %s945, 128, 128, 8
        $region48: #{tpu_custom_call.1} parent=31 // pred_fallthru
          _
        // Predicated region
        $region49: #{tpu_custom_call.1} parent=31 // pred_check
          %p970 = pneg %p138
        $region50: #{tpu_custom_call.1} parent=31 // pred_check_branch
          %972 = sbr.rel (%p970) target = $region52
        $region51: #{tpu_custom_call.1} parent=31 // pred_region
          %s974 = ssub.s32 32, 32
          %975 = vsyncadd %s950, %s974
          %s976 = smul.addr %s26, 32
          %s977 = scalar_lea.hbm %s4, %s976
          %s979 = sshll.u32 %s953, 4
          %s980 = int_to_ptr.vmem [resolvable:$true] %s979
          %982 = dma.vmem_to_hbm [thread:$0]  %s980, 32, %s977, %s950
        $region52: #{tpu_custom_call.1} parent=31 // pred_fallthru
          _
      $region32: #{tpu_custom_call.1} parent=5 // pred_fallthru
        _
      %p983 = scmp.le.s32.totalorder 2, %s21
      // Predicated region
      $region53: #{tpu_custom_call.1} parent=5 // pred_check
        %p984 = pneg %p983
      $region54: #{tpu_custom_call.1} parent=5 // pred_check_branch
        %986 = sbr.rel (%p984) target = $region56
      $region55: #{tpu_custom_call.1} parent=5 // pred_region
        %s987 = ssub.s32 %s21, 2
        // Predicated region
        $region57: #{tpu_custom_call.1} parent=55 // pred_check
          %p988 = pneg %p118
        $region58: #{tpu_custom_call.1} parent=55 // pred_check_branch
          %990 = sbr.rel (%p988) target = $region60
        $region59: #{tpu_custom_call.1} parent=55 // pred_region
          %s991 = sand.u32 %s103, 1
          %s992 = scalar_lea.sflag [#allocation4], %s991
          %s993 = sand.u32 %s103, 1
          %s994 = smul.addr %s993, 64
          %s995 = scalar_lea.vmem [#allocation8], %s994
          %996 = dma.done %s992, 1024
        $region60: #{tpu_custom_call.1} parent=55 // pred_fallthru
          _
        // Predicated region
        $region61: #{tpu_custom_call.1} parent=55 // pred_check
          %p997 = pneg %p144
        $region62: #{tpu_custom_call.1} parent=55 // pred_check_branch
          %999 = sbr.rel (%p997) target = $region64
        $region63: #{tpu_custom_call.1} parent=55 // pred_region
          %s1000 = sand.u32 %s129, 1
          %s1001 = scalar_lea.sflag [#allocation10], %s1000
          %s1002 = sand.u32 %s129, 1
          %s1003 = smul.addr %s1002, 2
          %s1004 = scalar_lea.vmem [#allocation9], %s1003
          %1005 = dma.done %s1001, 32
        $region64: #{tpu_custom_call.1} parent=55 // pred_fallthru
          _
      $region56: #{tpu_custom_call.1} parent=5 // pred_fallthru
        _
    $region6: #{tpu_custom_call.1} parent=1 // loop_footer
      %s25 = sadd.s32 1, %s21
    $region7: #{tpu_custom_call.1} parent=1 // loop_footer_branch
      %20 = sbr.rel target = $region3
    $region8: #{tpu_custom_call.1} parent=1 // loop_exit
      _
    %1006 = vsyncpa [#allocation3], 1
    %s1007 = scalar_lea.sflag [#allocation3], 1
    %1008 = vsyncpa %s1007, 1
    %1009 = vsyncpa [#allocation6], 1
    %1010 = vsyncpa [#allocation4], 1
    %s1011 = scalar_lea.sflag [#allocation4], 1
    %1012 = vsyncpa %s1011, 1
    %1013 = vsyncpa [#allocation10], 1
    %s1014 = scalar_lea.sflag [#allocation10], 1
    %1015 = vsyncpa %s1014, 1

</llo_original>
